<compile_context>
chip_gen: v5e
topology: v5e:2x2
jax: 0.10.0
libtpu: 0.0.40
codegen_flags: <defaults>
</compile_context>

<pallas_src>
import functools

import jax
import jax.numpy as jnp
from jax import lax
from jax.experimental import pallas as pl
from jax.experimental.pallas import tpu as pltpu

HIDDEN = 128   # fixed by the PyTorch module
LANE = 128
BATCH_PAD = 16  # bf16 sublane packing for the h cast
UNROLL = 8      # cap on inner-loop unroll


def _round_up(x, m):
    return (x + m - 1) // m * m


def rnn_fwd_kernel(xp_ref,                        # (TL*Bp, H) bf16  pre-projected inputs (bias folded)
                   h0_ref,                        # (Bp, H) f32
                   whh_ref,                       # (H, H) bf16      W_hh^T
                   wfc_ref,                       # (H, Cp) f32      W_fc^T (padded)
                   bfc_ref,                       # (1, Cp) f32
                   out_ref,                       # (Bp, Cp) f32 logits
                   h_ref,                         # VMEM scratch (Bp, H) f32
                   *, time_tile, tail_valid, unroll):
    b_pad = h0_ref.shape[0]
    t_blk = pl.program_id(0)
    n_blk = pl.num_programs(0)

    @pl.when(t_blk == 0)
    def _init():
        h_ref[...] = h0_ref[...]

    whh = whh_ref[...]                 # loop invariant, bf16: 8 vregs

    def run_steps(n_steps):
        def step(i, h):
            row = pl.multiple_of(i * b_pad, b_pad)
            xt = xp_ref[pl.ds(row, b_pad), :].astype(jnp.float32)  # (Bp, H)
            hv = jnp.dot(h.astype(jnp.bfloat16), whh,
                         preferred_element_type=jnp.float32)
            return jnp.tanh(xt + hv)                               # f32 carry
        return lax.fori_loop(0, n_steps, step, h_ref[...],
                             unroll=min(unroll, n_steps))

    if tail_valid == time_tile:
        # L divides evenly into tiles: single statically-specialized path.
        h_ref[...] = run_steps(time_tile)
    else:
        # Tail tile has a statically-known shorter step count: specialize it
        # instead of a per-step runtime mask on the serial chain.
        @pl.when(t_blk < n_blk - 1)
        def _full():
            h_ref[...] = run_steps(time_tile)

        @pl.when(t_blk == n_blk - 1)
        def _tail():
            h_ref[...] = run_steps(tail_valid)

    @pl.when(t_blk == n_blk - 1)
    def _final():
        out_ref[...] = (jnp.dot(h_ref[...], wfc_ref[...],
                                preferred_element_type=jnp.float32)
                        + bfc_ref[...])


def rnn_forward(xp_flat_bf16, h0_pad, w_hh_t_bf16, w_fc_t_pad, b_fc_pad, *,
                b_pad, time_tile, tail_valid):
    n_rows, _ = xp_flat_bf16.shape
    row_blk = time_tile * b_pad
    n_tiles = n_rows // row_blk
    c_pad = w_fc_t_pad.shape[1]

    kernel = functools.partial(rnn_fwd_kernel, time_tile=time_tile,
                               tail_valid=tail_valid, unroll=UNROLL)

    grid_spec = pltpu.PrefetchScalarGridSpec(
        num_scalar_prefetch=0,
        grid=(n_tiles,),
        in_specs=[
            pl.BlockSpec((row_blk, HIDDEN), lambda t: (t, 0)),     # x_proj (streamed)
            pl.BlockSpec((b_pad, HIDDEN), lambda t: (0, 0)),       # h0
            pl.BlockSpec((HIDDEN, HIDDEN), lambda t: (0, 0)),      # W_hh^T (bf16)
            pl.BlockSpec((HIDDEN, c_pad), lambda t: (0, 0)),       # W_fc^T
            pl.BlockSpec((1, c_pad), lambda t: (0, 0)),            # b_fc
        ],
        out_specs=pl.BlockSpec((b_pad, c_pad), lambda t: (0, 0)),
        scratch_shapes=[
            pltpu.VMEM((b_pad, HIDDEN), jnp.float32),              # h state
        ],
    )
    return pl.pallas_call(
        kernel,
        out_shape=jax.ShapeDtypeStruct((b_pad, c_pad), jnp.float32),
        grid_spec=grid_spec,
        compiler_params=pltpu.CompilerParams(
            dimension_semantics=("arbitrary",),        # serial recurrence axis
            vmem_limit_bytes=32 * 1024 * 1024),
    )(xp_flat_bf16, h0_pad, w_hh_t_bf16, w_fc_t_pad, b_fc_pad)


def make_params(key, vocab_size, embedding_dim, n_class):
    """Deterministic synthetic parameters matching the module's shapes."""
    ks = jax.random.split(key, 7)
    s = 1.0 / jnp.sqrt(HIDDEN)
    emb = jax.random.normal(ks[0], (vocab_size, embedding_dim), jnp.float32)
    w_ih = jax.random.uniform(ks[1], (HIDDEN, embedding_dim), jnp.float32, -s, s)
    w_hh = jax.random.uniform(ks[2], (HIDDEN, HIDDEN), jnp.float32, -s, s)
    b_ih = jax.random.uniform(ks[3], (HIDDEN,), jnp.float32, -s, s)
    b_hh = jax.random.uniform(ks[4], (HIDDEN,), jnp.float32, -s, s)
    w_fc = jax.random.uniform(ks[5], (n_class, HIDDEN), jnp.float32, -s, s)
    b_fc = jax.random.uniform(ks[6], (n_class,), jnp.float32, -s, s)
    return dict(emb=emb, w_ih=w_ih, w_hh=w_hh, b_ih=b_ih, b_hh=b_hh,
                w_fc=w_fc, b_fc=b_fc)


@functools.partial(jax.jit, static_argnames=("time_tile",))
def rnn_model_forward(params, x_ids, h0_key, *, time_tile=128):
    """Full forward pass of the module (embedding glue in plain JAX)."""
    B, L = x_ids.shape
    C = params["w_fc"].shape[0]

    b_pad = _round_up(max(B, 1), BATCH_PAD)     # bf16-friendly batch padding
    c_pad = _round_up(max(C, 1), LANE)          # lane-dense logits
    time_tile = max(1, min(time_tile, L))
    l_pad = _round_up(L, time_tile)
    n_tiles = l_pad // time_tile
    tail_valid = L - (n_tiles - 1) * time_tile  # static: steps in last tile

    # Pre-project the embedding table once: (V, E) @ (E, H) + bias -> (V, H),
    # then gather projected rows directly into time-major layout (L, B, H).
    emb_proj = (params["emb"] @ params["w_ih"].T
                + params["b_ih"] + params["b_hh"])                  # (V, H) f32
    xp_tm = jnp.take(emb_proj, x_ids.T, axis=0)                     # (L, B, H)
    xp_tm = jnp.pad(xp_tm, ((0, l_pad - L), (0, b_pad - B), (0, 0)))
    xp_flat = xp_tm.reshape(l_pad * b_pad, HIDDEN).astype(jnp.bfloat16)

    # torch.randn(1, B, 128) initial hidden state (deterministic here).
    h0 = jax.random.normal(h0_key, (B, HIDDEN), jnp.float32)
    h0_pad = jnp.pad(h0, ((0, b_pad - B), (0, 0)))

    w_hh_t = params["w_hh"].T.astype(jnp.bfloat16)                  # (H, H) bf16
    w_fc_t = jnp.pad(params["w_fc"].T, ((0, 0), (0, c_pad - C)))    # (H, Cp)
    b_fc = jnp.pad(params["b_fc"], (0, c_pad - C)).reshape(1, c_pad)

    out_pad = rnn_forward(xp_flat, h0_pad, w_hh_t, w_fc_t, b_fc,
                          b_pad=b_pad, time_tile=time_tile,
                          tail_valid=tail_valid)
    return out_pad[:B, :C]                                          # (B, n_class)


def reference_forward(params, x_ids, h0_key):
    """Pure-JAX f32 reference for correctness checking."""
    B, L = x_ids.shape
    x_emb = jnp.take(params["emb"], x_ids, axis=0)
    h = jax.random.normal(h0_key, (B, HIDDEN), jnp.float32)
    for t in range(L):
        h = jnp.tanh(x_emb[:, t, :] @ params["w_ih"].T
                     + h @ params["w_hh"].T
                     + params["b_ih"] + params["b_hh"])
    return h @ params["w_fc"].T + params["b_fc"]


if __name__ == "__main__":
    vocab_size = 100
    embedding_dim = 32
    n_class = 4
    B, L = 2, 8

    key = jax.random.PRNGKey(0)
    k_param, k_ids, k_h0 = jax.random.split(key, 3)

    params = make_params(k_param, vocab_size, embedding_dim, n_class)
    x_ids = jax.random.randint(k_ids, (B, L), 0, vocab_size, dtype=jnp.int32)

    ref = reference_forward(params, x_ids, k_h0)

    # time_tile=3 -> 3 grid steps (8 = 3 + 3 + 2): exercises init / carry /
    # finalize and the statically-specialized tail tile.
    out = rnn_model_forward(params, x_ids, k_h0, time_tile=3)
    out = jax.block_until_ready(out)
    assert out.shape == (B, n_class), out.shape
    # bf16 input projection / recurrence operands (f32 accumulation & carry)
    # vs f32 reference.
    assert jnp.allclose(out, ref, atol=2e-2, rtol=2e-2), (out, ref)

    # Default tiling: whole sequence in one tile (no-tail static path).
    out1 = jax.block_until_ready(rnn_model_forward(params, x_ids, k_h0))
    assert jnp.allclose(out1, ref, atol=2e-2, rtol=2e-2), (out1, ref)

    print("KERNEL_OK")
</pallas_src>

<mosaic_0001>
module attributes {stable_mosaic.version = 11 : i64} {
  func.func @rnn_fwd_kernel(%arg0: i32, %arg1: memref<48x128xbf16, #tpu.memory_space<vmem>>, %arg2: memref<16x128xf32, #tpu.memory_space<vmem>>, %arg3: memref<128x128xbf16, #tpu.memory_space<vmem>>, %arg4: memref<128x128xf32, #tpu.memory_space<vmem>>, %arg5: memref<1x128xf32, #tpu.memory_space<vmem>>, %arg6: memref<16x128xf32, #tpu.memory_space<vmem>>, %arg7: memref<16x128xf32, #tpu.memory_space<vmem>>) attributes {dimension_semantics = [#tpu.dimension_semantics<arbitrary>], iteration_bounds = array<i64: 3>, scalar_prefetch = 0 : i64, scratch_operands = 1 : i64, tpu.core_type = #tpu.core_type<tc>, window_params = [{transform_indices = @transform_0, window_bounds = array<i64: 48, 128>}, {pipeline_mode = #tpu.pipeline_mode<synchronous>, transform_indices = @transform_1, window_bounds = array<i64: 16, 128>}, {pipeline_mode = #tpu.pipeline_mode<synchronous>, transform_indices = @transform_2, window_bounds = array<i64: 128, 128>}, {pipeline_mode = #tpu.pipeline_mode<synchronous>, transform_indices = @transform_3, window_bounds = array<i64: 128, 128>}, {pipeline_mode = #tpu.pipeline_mode<synchronous>, transform_indices = @transform_4, window_bounds = array<i64: 1, 128>}, {pipeline_mode = #tpu.pipeline_mode<synchronous>, transform_indices = @transform_5, window_bounds = array<i64: 16, 128>}]} {
    %c0_i32 = arith.constant 0 : i32
    %0 = arith.cmpi eq, %arg0, %c0_i32 : i32
    %1 = arith.extui %0 : i1 to i32
    %c0_i32_0 = arith.constant 0 : i32
    %2 = arith.cmpi ne, %1, %c0_i32_0 : i32
    scf.if %2 {
      %c0_7 = arith.constant 0 : index
      %c0_8 = arith.constant 0 : index
      %13 = vector.load %arg2[%c0_7, %c0_8] : memref<16x128xf32, #tpu.memory_space<vmem>>, vector<16x128xf32>
      %c0_9 = arith.constant 0 : index
      %c0_10 = arith.constant 0 : index
      %14 = vector.load %arg7[%c0_9, %c0_10] : memref<16x128xf32, #tpu.memory_space<vmem>>, vector<16x128xf32>
      tpu.vector_store %arg7[%c0_9, %c0_10], %13 {strides = array<i32>} : memref<16x128xf32, #tpu.memory_space<vmem>>, vector<16x128xf32>,
    } else {
    }
    %c0 = arith.constant 0 : index
    %c0_1 = arith.constant 0 : index
    %3 = vector.load %arg3[%c0, %c0_1] : memref<128x128xbf16, #tpu.memory_space<vmem>>, vector<128x128xbf16>
    %c2_i32 = arith.constant 2 : i32
    %4 = arith.cmpi slt, %arg0, %c2_i32 : i32
    %5 = arith.extui %4 : i1 to i32
    %c0_i32_2 = arith.constant 0 : i32
    %6 = arith.cmpi ne, %5, %c0_i32_2 : i32
    scf.if %6 {
      %c0_7 = arith.constant 0 : index
      %c0_8 = arith.constant 0 : index
      %13 = vector.load %arg7[%c0_7, %c0_8] : memref<16x128xf32, #tpu.memory_space<vmem>>, vector<16x128xf32>
      %c0_i32_9 = arith.constant 0 : i32
      %c16_i32 = arith.constant 16 : i32
      %14 = arith.muli %c0_i32_9, %c16_i32 : i32
      %15 = tpu.assume_multiple %14, 16 : i32
      %16 = arith.index_cast %15 : i32 to index
      %c0_10 = arith.constant 0 : index
      %17 = vector.load %arg1[%16, %c0_10] : memref<48x128xbf16, #tpu.memory_space<vmem>>, vector<16x128xbf16>
      %18 = arith.extf %17 : vector<16x128xbf16> to vector<16x128xf32>
      %19 = arith.truncf %13 : vector<16x128xf32> to vector<16x128xbf16>
      %cst = arith.constant dense<0.000000e+00> : vector<16x128xf32>
      %20 = tpu.matmul %19, %3, %cst {dimension_numbers = #tpu.dot_dimension_numbers<[1], [0], [0], [1], [0, 0, 1, 1], [], []>} : vector<16x128xbf16>, vector<128x128xbf16>, vector<16x128xf32> -> vector<16x128xf32>
      %21 = arith.addf %18, %20 : vector<16x128xf32>
      %22 = math.tanh %21 : vector<16x128xf32>
      %c1_i32 = arith.constant 1 : i32
      %c16_i32_11 = arith.constant 16 : i32
      %23 = arith.muli %c1_i32, %c16_i32_11 : i32
      %24 = tpu.assume_multiple %23, 16 : i32
      %25 = arith.index_cast %24 : i32 to index
      %c0_12 = arith.constant 0 : index
      %26 = vector.load %arg1[%25, %c0_12] : memref<48x128xbf16, #tpu.memory_space<vmem>>, vector<16x128xbf16>
      %27 = arith.extf %26 : vector<16x128xbf16> to vector<16x128xf32>
      %28 = arith.truncf %22 : vector<16x128xf32> to vector<16x128xbf16>
      %cst_13 = arith.constant dense<0.000000e+00> : vector<16x128xf32>
      %29 = tpu.matmul %28, %3, %cst_13 {dimension_numbers = #tpu.dot_dimension_numbers<[1], [0], [0], [1], [0, 0, 1, 1], [], []>} : vector<16x128xbf16>, vector<128x128xbf16>, vector<16x128xf32> -> vector<16x128xf32>
      %30 = arith.addf %27, %29 : vector<16x128xf32>
      %31 = math.tanh %30 : vector<16x128xf32>
      %c2_i32_14 = arith.constant 2 : i32
      %c16_i32_15 = arith.constant 16 : i32
      %32 = arith.muli %c2_i32_14, %c16_i32_15 : i32
      %33 = tpu.assume_multiple %32, 16 : i32
      %34 = arith.index_cast %33 : i32 to index
      %c0_16 = arith.constant 0 : index
      %35 = vector.load %arg1[%34, %c0_16] : memref<48x128xbf16, #tpu.memory_space<vmem>>, vector<16x128xbf16>
      %36 = arith.extf %35 : vector<16x128xbf16> to vector<16x128xf32>
      %37 = arith.truncf %31 : vector<16x128xf32> to vector<16x128xbf16>
      %cst_17 = arith.constant dense<0.000000e+00> : vector<16x128xf32>
      %38 = tpu.matmul %37, %3, %cst_17 {dimension_numbers = #tpu.dot_dimension_numbers<[1], [0], [0], [1], [0, 0, 1, 1], [], []>} : vector<16x128xbf16>, vector<128x128xbf16>, vector<16x128xf32> -> vector<16x128xf32>
      %39 = arith.addf %36, %38 : vector<16x128xf32>
      %40 = math.tanh %39 : vector<16x128xf32>
      %c3_i32 = arith.constant 3 : i32
      %c0_18 = arith.constant 0 : index
      %c0_19 = arith.constant 0 : index
      %41 = vector.load %arg7[%c0_18, %c0_19] : memref<16x128xf32, #tpu.memory_space<vmem>>, vector<16x128xf32>
      tpu.vector_store %arg7[%c0_18, %c0_19], %40 {strides = array<i32>} : memref<16x128xf32, #tpu.memory_space<vmem>>, vector<16x128xf32>,
    } else {
    }
    %c2_i32_3 = arith.constant 2 : i32
    %7 = arith.cmpi eq, %arg0, %c2_i32_3 : i32
    %8 = arith.extui %7 : i1 to i32
    %c0_i32_4 = arith.constant 0 : i32
    %9 = arith.cmpi ne, %8, %c0_i32_4 : i32
    scf.if %9 {
      %c0_7 = arith.constant 0 : index
      %c0_8 = arith.constant 0 : index
      %13 = vector.load %arg7[%c0_7, %c0_8] : memref<16x128xf32, #tpu.memory_space<vmem>>, vector<16x128xf32>
      %c0_i32_9 = arith.constant 0 : i32
      %c16_i32 = arith.constant 16 : i32
      %14 = arith.muli %c0_i32_9, %c16_i32 : i32
      %15 = tpu.assume_multiple %14, 16 : i32
      %16 = arith.index_cast %15 : i32 to index
      %c0_10 = arith.constant 0 : index
      %17 = vector.load %arg1[%16, %c0_10] : memref<48x128xbf16, #tpu.memory_space<vmem>>, vector<16x128xbf16>
      %18 = arith.extf %17 : vector<16x128xbf16> to vector<16x128xf32>
      %19 = arith.truncf %13 : vector<16x128xf32> to vector<16x128xbf16>
      %cst = arith.constant dense<0.000000e+00> : vector<16x128xf32>
      %20 = tpu.matmul %19, %3, %cst {dimension_numbers = #tpu.dot_dimension_numbers<[1], [0], [0], [1], [0, 0, 1, 1], [], []>} : vector<16x128xbf16>, vector<128x128xbf16>, vector<16x128xf32> -> vector<16x128xf32>
      %21 = arith.addf %18, %20 : vector<16x128xf32>
      %22 = math.tanh %21 : vector<16x128xf32>
      %c1_i32 = arith.constant 1 : i32
      %c16_i32_11 = arith.constant 16 : i32
      %23 = arith.muli %c1_i32, %c16_i32_11 : i32
      %24 = tpu.assume_multiple %23, 16 : i32
      %25 = arith.index_cast %24 : i32 to index
      %c0_12 = arith.constant 0 : index
      %26 = vector.load %arg1[%25, %c0_12] : memref<48x128xbf16, #tpu.memory_space<vmem>>, vector<16x128xbf16>
      %27 = arith.extf %26 : vector<16x128xbf16> to vector<16x128xf32>
      %28 = arith.truncf %22 : vector<16x128xf32> to vector<16x128xbf16>
      %cst_13 = arith.constant dense<0.000000e+00> : vector<16x128xf32>
      %29 = tpu.matmul %28, %3, %cst_13 {dimension_numbers = #tpu.dot_dimension_numbers<[1], [0], [0], [1], [0, 0, 1, 1], [], []>} : vector<16x128xbf16>, vector<128x128xbf16>, vector<16x128xf32> -> vector<16x128xf32>
      %30 = arith.addf %27, %29 : vector<16x128xf32>
      %31 = math.tanh %30 : vector<16x128xf32>
      %c2_i32_14 = arith.constant 2 : i32
      %c0_15 = arith.constant 0 : index
      %c0_16 = arith.constant 0 : index
      %32 = vector.load %arg7[%c0_15, %c0_16] : memref<16x128xf32, #tpu.memory_space<vmem>>, vector<16x128xf32>
      tpu.vector_store %arg7[%c0_15, %c0_16], %31 {strides = array<i32>} : memref<16x128xf32, #tpu.memory_space<vmem>>, vector<16x128xf32>,
    } else {
    }
    %c2_i32_5 = arith.constant 2 : i32
    %10 = arith.cmpi eq, %arg0, %c2_i32_5 : i32
    %11 = arith.extui %10 : i1 to i32
    %c0_i32_6 = arith.constant 0 : i32
    %12 = arith.cmpi ne, %11, %c0_i32_6 : i32
    scf.if %12 {
      %c0_7 = arith.constant 0 : index
      %c0_8 = arith.constant 0 : index
      %13 = vector.load %arg7[%c0_7, %c0_8] : memref<16x128xf32, #tpu.memory_space<vmem>>, vector<16x128xf32>
      %c0_9 = arith.constant 0 : index
      %c0_10 = arith.constant 0 : index
      %14 = vector.load %arg4[%c0_9, %c0_10] : memref<128x128xf32, #tpu.memory_space<vmem>>, vector<128x128xf32>
      %cst = arith.constant dense<0.000000e+00> : vector<16x128xf32>
      %15 = tpu.matmul %13, %14, %cst {dimension_numbers = #tpu.dot_dimension_numbers<[1], [0], [0], [1], [0, 0, 1, 1], [], []>} : vector<16x128xf32>, vector<128x128xf32>, vector<16x128xf32> -> vector<16x128xf32>
      %c0_11 = arith.constant 0 : index
      %c0_12 = arith.constant 0 : index
      %16 = vector.load %arg5[%c0_11, %c0_12] : memref<1x128xf32, #tpu.memory_space<vmem>>, vector<1x128xf32>
      %17 = vector.broadcast %16 : vector<1x128xf32> to vector<16x128xf32>
      %18 = arith.addf %15, %17 : vector<16x128xf32>
      %c0_13 = arith.constant 0 : index
      %c0_14 = arith.constant 0 : index
      %19 = vector.load %arg6[%c0_13, %c0_14] : memref<16x128xf32, #tpu.memory_space<vmem>>, vector<16x128xf32>
      tpu.vector_store %arg6[%c0_13, %c0_14], %18 {strides = array<i32>} : memref<16x128xf32, #tpu.memory_space<vmem>>, vector<16x128xf32>,
    } else {
    }
    return
  }
  func.func @transform_0(%arg0: i32) -> (i32, i32) {
    %c0_i32 = arith.constant 0 : i32
    %c0_i32_0 = arith.constant 0 : i32
    return %arg0, %c0_i32 : i32, i32
  }
  func.func @transform_1(%arg0: i32) -> (i32, i32) {
    %c0_i32 = arith.constant 0 : i32
    %c0_i32_0 = arith.constant 0 : i32
    %c0_i32_1 = arith.constant 0 : i32
    return %c0_i32, %c0_i32_0 : i32, i32
  }
  func.func @transform_2(%arg0: i32) -> (i32, i32) {
    %c0_i32 = arith.constant 0 : i32
    %c0_i32_0 = arith.constant 0 : i32
    %c0_i32_1 = arith.constant 0 : i32
    return %c0_i32, %c0_i32_0 : i32, i32
  }
  func.func @transform_3(%arg0: i32) -> (i32, i32) {
    %c0_i32 = arith.constant 0 : i32
    %c0_i32_0 = arith.constant 0 : i32
    %c0_i32_1 = arith.constant 0 : i32
    return %c0_i32, %c0_i32_0 : i32, i32
  }
  func.func @transform_4(%arg0: i32) -> (i32, i32) {
    %c0_i32 = arith.constant 0 : i32
    %c0_i32_0 = arith.constant 0 : i32
    %c0_i32_1 = arith.constant 0 : i32
    return %c0_i32, %c0_i32_0 : i32, i32
  }
  func.func @transform_5(%arg0: i32) -> (i32, i32) {
    %c0_i32 = arith.constant 0 : i32
    %c0_i32_0 = arith.constant 0 : i32
    %c0_i32_1 = arith.constant 0 : i32
    return %c0_i32, %c0_i32_0 : i32, i32
  }
}

</mosaic_0001>

<llo_original>
// kernel: rnn_model_forward.1
$region0: #{rnn_model_forward.1}
  #allocation0 [shape = 'u32[]', space=smem, size = 0x4, offset = 0x4, fixed_abs, tag = 'smem constant byte address 0x4 - core index']
  #allocation1 [shape = 'u32[72,128]{1,0:T(1,128)}', space=vmem, size = 0x9000, scoped, tag = 'internal scratch']
  #allocation2 [shape = 'f32[16,128]{1,0:T(8,128)}', space=vmem, size = 0x2000, scoped, tag = 'scratch operand']
  %s0 = inlined_call_operand.vmem [shape: bf16[144,128], index: 0, kind: input, shape index: {}]
  %s1 = inlined_call_operand.vmem [shape: f32[16,128], index: 1, kind: input, shape index: {}]
  %s2 = inlined_call_operand.vmem [shape: bf16[128,128], index: 2, kind: input, shape index: {}]
  %s3 = inlined_call_operand.vmem [shape: f32[128,128], index: 3, kind: input, shape index: {}]
  %s4 = inlined_call_operand.vmem [shape: f32[1,128], index: 4, kind: input, shape index: {}]
  %s5 = inlined_call_operand.vmem [shape: f32[16,128], index: 5, kind: output, shape index: {}]
  %s6 = sld [smem:[#allocation0]]
  $region65: #{rnn_model_forward.1} parent=0
    _
  %s8 = ssub.s32 1, %s6
  %s9 = scalar_select 0, %s8, %s6
  loop: start=0, step=1, limit=5
  $region2: #{rnn_model_forward.1} parent=0 // loop_pre_header
    _
  $region3: #{rnn_model_forward.1} parent=0 // loop_header
    %s11 = sphi 0, %s15
    %p12 = scmp.ge.s32.totalorder %s11, 5
    %s21 = sphi 0, %s23
    %s24 = sphi 0, %s21
    %s25 = sphi 0, %s24
    %s41 = sphi 0, %s25
    %s45 = sphi 0, %s45
    %s47 = sphi 0, %s45
    %s48 = sphi 0, %s47
    %s62 = sphi 0, %s48
    %s66 = sphi 0, %s66
    %s68 = sphi 0, %s66
    %s69 = sphi 0, %s68
    %s83 = sphi 0, %s69
    %s87 = sphi 0, %s87
    %s89 = sphi 0, %s87
    %s90 = sphi 0, %s89
    %s104 = sphi 0, %s90
    %s108 = sphi 0, %s108
    %s110 = sphi 0, %s108
    %s111 = sphi 0, %s110
    %s125 = sphi 0, %s111
    %s129 = sphi 0, %s129
    %s131 = sphi 0, %s129
    %s132 = sphi 0, %s131
    %s146 = sphi 0, %s132
  $region4: #{rnn_model_forward.1} parent=0 // loop_header_branch
    %14 = sbr.rel (%p12) target = $region8
  $region5: #{rnn_model_forward.1} parent=0 // loop_body
    %s16 = ssub.s32 %s11, 1
    %s17 = ssub.s32 %s11, 2
    %s18 = sadd.s32 %s11, 1
    %s19 = ssub.s32 %s11, %s18
    %p20 = scmp.eq.s32.totalorder %s19, 0
    %s22 = sadd.s32 %s21, 1
    %s23 = scalar_select %p20, %s21, %s22
    %p26 = pneg %p20
    %p27 = scmp.eq.s32.totalorder %s11, 2
    %p28 = por %p26, %p27
    %p29 = scmp.ne.s32.totalorder %s21, %s24
    %p30 = scmp.eq.s32.totalorder %s11, 0
    %p31 = por %p29, %p30
    %p32 = scmp.ne.s32.totalorder %s21, %s24
    %p33 = scmp.eq.s32.totalorder %s16, 2
    %p34 = por %p32, %p33
    %p35 = scmp.ne.s32.totalorder %s24, %s25
    %p36 = scmp.eq.s32.totalorder %s16, 0
    %p37 = por %p35, %p36
    %p38 = scmp.ne.s32.totalorder %s24, %s25
    %p39 = scmp.eq.s32.totalorder %s17, 2
    %p40 = por %p38, %p39
    %p42 = scmp.ne.s32.totalorder %s25, %s41
    %p43 = scmp.eq.s32.totalorder %s17, 0
    %p44 = por %p42, %p43
    %s46 = sadd.s32 %s45, 1
    %p49 = scmp.eq.s32.totalorder %s11, 2
    %p50 = scmp.ne.s32.totalorder %s45, %s47
    %p51 = scmp.eq.s32.totalorder %s11, 0
    %p52 = por %p50, %p51
    %p53 = scmp.ne.s32.totalorder %s45, %s47
    %p54 = scmp.eq.s32.totalorder %s16, 2
    %p55 = por %p53, %p54
    %p56 = scmp.ne.s32.totalorder %s47, %s48
    %p57 = scmp.eq.s32.totalorder %s16, 0
    %p58 = por %p56, %p57
    %p59 = scmp.ne.s32.totalorder %s47, %s48
    %p60 = scmp.eq.s32.totalorder %s17, 2
    %p61 = por %p59, %p60
    %p63 = scmp.ne.s32.totalorder %s48, %s62
    %p64 = scmp.eq.s32.totalorder %s17, 0
    %p65 = por %p63, %p64
    %s67 = sadd.s32 %s66, 1
    %p70 = scmp.eq.s32.totalorder %s11, 2
    %p71 = scmp.ne.s32.totalorder %s66, %s68
    %p72 = scmp.eq.s32.totalorder %s11, 0
    %p73 = por %p71, %p72
    %p74 = scmp.ne.s32.totalorder %s66, %s68
    %p75 = scmp.eq.s32.totalorder %s16, 2
    %p76 = por %p74, %p75
    %p77 = scmp.ne.s32.totalorder %s68, %s69
    %p78 = scmp.eq.s32.totalorder %s16, 0
    %p79 = por %p77, %p78
    %p80 = scmp.ne.s32.totalorder %s68, %s69
    %p81 = scmp.eq.s32.totalorder %s17, 2
    %p82 = por %p80, %p81
    %p84 = scmp.ne.s32.totalorder %s69, %s83
    %p85 = scmp.eq.s32.totalorder %s17, 0
    %p86 = por %p84, %p85
    %s88 = sadd.s32 %s87, 1
    %p91 = scmp.eq.s32.totalorder %s11, 2
    %p92 = scmp.ne.s32.totalorder %s87, %s89
    %p93 = scmp.eq.s32.totalorder %s11, 0
    %p94 = por %p92, %p93
    %p95 = scmp.ne.s32.totalorder %s87, %s89
    %p96 = scmp.eq.s32.totalorder %s16, 2
    %p97 = por %p95, %p96
    %p98 = scmp.ne.s32.totalorder %s89, %s90
    %p99 = scmp.eq.s32.totalorder %s16, 0
    %p100 = por %p98, %p99
    %p101 = scmp.ne.s32.totalorder %s89, %s90
    %p102 = scmp.eq.s32.totalorder %s17, 2
    %p103 = por %p101, %p102
    %p105 = scmp.ne.s32.totalorder %s90, %s104
    %p106 = scmp.eq.s32.totalorder %s17, 0
    %p107 = por %p105, %p106
    %s109 = sadd.s32 %s108, 1
    %p112 = scmp.eq.s32.totalorder %s11, 2
    %p113 = scmp.ne.s32.totalorder %s108, %s110
    %p114 = scmp.eq.s32.totalorder %s11, 0
    %p115 = por %p113, %p114
    %p116 = scmp.ne.s32.totalorder %s108, %s110
    %p117 = scmp.eq.s32.totalorder %s16, 2
    %p118 = por %p116, %p117
    %p119 = scmp.ne.s32.totalorder %s110, %s111
    %p120 = scmp.eq.s32.totalorder %s16, 0
    %p121 = por %p119, %p120
    %p122 = scmp.ne.s32.totalorder %s110, %s111
    %p123 = scmp.eq.s32.totalorder %s17, 2
    %p124 = por %p122, %p123
    %p126 = scmp.ne.s32.totalorder %s111, %s125
    %p127 = scmp.eq.s32.totalorder %s17, 0
    %p128 = por %p126, %p127
    %s130 = sadd.s32 %s129, 1
    %p133 = scmp.eq.s32.totalorder %s11, 2
    %p134 = scmp.ne.s32.totalorder %s129, %s131
    %p135 = scmp.eq.s32.totalorder %s11, 0
    %p136 = por %p134, %p135
    %p137 = scmp.ne.s32.totalorder %s129, %s131
    %p138 = scmp.eq.s32.totalorder %s16, 2
    %p139 = por %p137, %p138
    %p140 = scmp.ne.s32.totalorder %s131, %s132
    %p141 = scmp.eq.s32.totalorder %s16, 0
    %p142 = por %p140, %p141
    %p143 = scmp.ne.s32.totalorder %s131, %s132
    %p144 = scmp.eq.s32.totalorder %s17, 2
    %p145 = por %p143, %p144
    %p147 = scmp.ne.s32.totalorder %s132, %s146
    %p148 = scmp.eq.s32.totalorder %s17, 0
    %p149 = por %p147, %p148
    %p150 = scmp.le.s32.totalorder 1, %s11
    %p151 = scmp.lt.s32.totalorder %s11, 4
    %p152 = pnand %p150, %p151
    %p153 = pneg %p152
    // Predicated region
    $region9: #{rnn_model_forward.1} parent=5 // pred_check
      _
    $region10: #{rnn_model_forward.1} parent=5 // pred_check_branch
      %155 = sbr.rel (%p152) target = $region12
    $region11: #{rnn_model_forward.1} parent=5 // pred_region
      %s156 = ssub.s32 %s11, 1
      // Predicated region
      $region13: #{rnn_model_forward.1} parent=11 // pred_check
        %p157 = pneg %p58
      $region14: #{rnn_model_forward.1} parent=11 // pred_check_branch
        %159 = sbr.rel (%p157) target = $region16
      $region15: #{rnn_model_forward.1} parent=11 // pred_region
        _
      $region16: #{rnn_model_forward.1} parent=11 // pred_fallthru
        _
      // Predicated region
      $region17: #{rnn_model_forward.1} parent=11 // pred_check
        %p160 = pneg %p79
      $region18: #{rnn_model_forward.1} parent=11 // pred_check_branch
        %162 = sbr.rel (%p160) target = $region20
      $region19: #{rnn_model_forward.1} parent=11 // pred_region
        _
      $region20: #{rnn_model_forward.1} parent=11 // pred_fallthru
        _
      // Predicated region
      $region21: #{rnn_model_forward.1} parent=11 // pred_check
        %p163 = pneg %p100
      $region22: #{rnn_model_forward.1} parent=11 // pred_check_branch
        %165 = sbr.rel (%p163) target = $region24
      $region23: #{rnn_model_forward.1} parent=11 // pred_region
        _
      $region24: #{rnn_model_forward.1} parent=11 // pred_fallthru
        _
      // Predicated region
      $region25: #{rnn_model_forward.1} parent=11 // pred_check
        %p166 = pneg %p121
      $region26: #{rnn_model_forward.1} parent=11 // pred_check_branch
        %168 = sbr.rel (%p166) target = $region28
      $region27: #{rnn_model_forward.1} parent=11 // pred_region
        _
      $region28: #{rnn_model_forward.1} parent=11 // pred_fallthru
        _
    $region12: #{rnn_model_forward.1} parent=5 // pred_fallthru
      _
    %p169 = scmp.lt.s32.totalorder %s11, 3
    // Predicated region
    $region29: #{rnn_model_forward.1} parent=5 // pred_check
      %p170 = pneg %p169
    $region30: #{rnn_model_forward.1} parent=5 // pred_check_branch
      %172 = sbr.rel (%p170) target = $region32
    $region31: #{rnn_model_forward.1} parent=5 // pred_region
      // Predicated region
      $region33: #{rnn_model_forward.1} parent=31 // pred_check
        %p173 = pneg %p31
      $region34: #{rnn_model_forward.1} parent=31 // pred_check_branch
        %175 = sbr.rel (%p173) target = $region36
      $region35: #{rnn_model_forward.1} parent=31 // pred_region
        %s176 = smul.u32 6, %s11
        %p177 = scmp.lt.s32.totalorder %s176, 17
        %s178 = scalar_select %p177, %s176, 17
        %s179 = smul.addr %s178, 4
        %s180 = scalar_lea.vmem %s0, %s179
        %s181 = smul.u32 6, %s11
      $region36: #{rnn_model_forward.1} parent=31 // pred_fallthru
        _
    $region32: #{rnn_model_forward.1} parent=5 // pred_fallthru
      _
    %p182 = scmp.le.s32.totalorder 1, %s11
    %p183 = scmp.lt.s32.totalorder %s11, 4
    %p184 = pnand %p182, %p183
    %p185 = pneg %p184
    // Predicated region
    $region37: #{rnn_model_forward.1} parent=5 // pred_check
      _
    $region38: #{rnn_model_forward.1} parent=5 // pred_check_branch
      %187 = sbr.rel (%p184) target = $region40
    $region39: #{rnn_model_forward.1} parent=5 // pred_region
      %s188 = ssub.s32 %s11, 1
      %s189 = smul.u32 6, %s16
      %p190 = scmp.lt.s32.totalorder %s189, 17
      %s191 = scalar_select %p190, %s189, 17
      %s192 = smul.addr %s191, 4
      %s193 = scalar_lea.vmem %s0, %s192
      %p194 = pneg %p37
      %p195 = pneg %p34
      %p196 = pneg %p58
      %p197 = pneg %p55
      %p198 = pneg %p79
      %p199 = pneg %p76
      %p200 = pneg %p100
      %p201 = pneg %p97
      %p202 = pneg %p121
      %p203 = pneg %p118
      %p204 = pneg %p142
      %p205 = pneg %p139
      %s206 = smul.u32 6, %s16
      %p207 = scmp.lt.s32.totalorder %s206, 17
      %s208 = scalar_select %p207, %s206, 17
      %s209 = smul.addr %s208, 4
      %s210 = scalar_lea.vmem %s0, %s209
      %s211 = smul.u32 6, %s16
      %p212 = scmp.eq.s32.totalorder %s16, 0
      // Predicated region
      $region41: #{rnn_model_forward.1} parent=39 // pred_check
        %p213 = pneg %p212
      $region42: #{rnn_model_forward.1} parent=39 // pred_check_branch
        %215 = sbr.rel (%p213) target = $region44
      $region43: #{rnn_model_forward.1} parent=39 // pred_region
        %v216 = vld [vmem:[%s1] sm:$0xff]
        %v217 = vld [vmem:[%s1 + $0x8] sm:$0xff]
        %218 = vst [vmem:[#allocation2] sm:$0xff] %v216
        %219 = vst [vmem:[#allocation2 + $0x8] sm:$0xff] %v217
      $region44: #{rnn_model_forward.1} parent=39 // pred_fallthru
        _
      %v220 = vld [vmem:[%s2] sm:$0xf]
      %v221 = vld [vmem:[%s2 + $0x4] sm:$0xf]
      %v222 = vld [vmem:[%s2 + $0x8] sm:$0xf]
      %v223 = vld [vmem:[%s2 + $0xc] sm:$0xf]
      %v224 = vld [vmem:[%s2 + $0x10] sm:$0xf]
      %v225 = vld [vmem:[%s2 + $0x14] sm:$0xf]
      %v226 = vld [vmem:[%s2 + $0x18] sm:$0xf]
      %v227 = vld [vmem:[%s2 + $0x1c] sm:$0xf]
      %v228 = vld [vmem:[%s2 + $0x20] sm:$0xf]
      %v229 = vld [vmem:[%s2 + $0x24] sm:$0xf]
      %v230 = vld [vmem:[%s2 + $0x28] sm:$0xf]
      %v231 = vld [vmem:[%s2 + $0x2c] sm:$0xf]
      %v232 = vld [vmem:[%s2 + $0x30] sm:$0xf]
      %v233 = vld [vmem:[%s2 + $0x34] sm:$0xf]
      %v234 = vld [vmem:[%s2 + $0x38] sm:$0xf]
      %v235 = vld [vmem:[%s2 + $0x3c] sm:$0xf]
      %p236 = scmp.lt.s32.totalorder %s16, 2
      // Predicated region
      $region45: #{rnn_model_forward.1} parent=39 // pred_check
        %p237 = pneg %p236
      $region46: #{rnn_model_forward.1} parent=39 // pred_check_branch
        %239 = sbr.rel (%p237) target = $region48
      $region47: #{rnn_model_forward.1} parent=39 // pred_region
        %v240 = vld [vmem:[#allocation2] sm:$0xff]
        %v241 = vld [vmem:[#allocation2 + $0x8] sm:$0xff]
        %v242 = vld [vmem:[%s210] sm:$0xf]
        %v243 = vld [vmem:[%s210 + $0x4] sm:$0xf]
        %v244 = vunpack.c.l.bf16 %v242
        %v245 = vunpack.c.l.bf16 %v243
        %v246 = vpack.c.bf16 %v241, %v240
        %v263 = vunpack.c.l.b16 %v220
        %v264 = vunpack.c.l.b16 %v221
        %v265 = vunpack.c.l.b16 %v222
        %v266 = vunpack.c.l.b16 %v223
        %v267 = vunpack.c.l.b16 %v224
        %v268 = vunpack.c.l.b16 %v225
        %v269 = vunpack.c.l.b16 %v226
        %v270 = vunpack.c.l.b16 %v227
        %v271 = vunpack.c.l.b16 %v228
        %v272 = vunpack.c.l.b16 %v229
        %v273 = vunpack.c.l.b16 %v230
        %v274 = vunpack.c.l.b16 %v231
        %v275 = vunpack.c.l.b16 %v232
        %v276 = vunpack.c.l.b16 %v233
        %v277 = vunpack.c.l.b16 %v234
        %v278 = vunpack.c.l.b16 %v235
        %v279 = vpack.c.b16 %v264, %v263
        %v280 = vpack.c.b16 %v266, %v265
        %v281 = vpack.c.b16 %v268, %v267
        %v282 = vpack.c.b16 %v270, %v269
        %v283 = vpack.c.b16 %v272, %v271
        %v284 = vpack.c.b16 %v274, %v273
        %v285 = vpack.c.b16 %v276, %v275
        %v286 = vpack.c.b16 %v278, %v277
        %295 = vmatpush.bf16.msra.mxu0 %v286
        %296 = vmatpush.bf16.msra.mxu0 %v285
        %297 = vmatpush.bf16.msra.mxu0 %v284
        %298 = vmatpush.bf16.msra.mxu0 %v283
        %299 = vmatpush.bf16.msra.mxu0 %v282
        %300 = vmatpush.bf16.msra.mxu0 %v281
        %301 = vmatpush.bf16.msra.mxu0 %v280
        %302 = vmatpush.bf16.msra.mxu0 %v279
        %303 = vmatmul.bf16.gmra.mxu0 %v246
        %v304 = vpop.f32.mrf.mxu0
        %v305 = vadd.f32 0.0, %v304
        %v306 = vpop.f32.mrf.mxu0
        %v307 = vadd.f32 0.0, %v306
        %308 = vdwg.mxu0
        %v309 = vadd.f32 %v244, %v305
        %v310 = vadd.f32 %v245, %v307
        %v311 = vtanh.pop %v309
        %v312 = vtanh.pop %v310
        %s313 = scalar_lea.vmem %s210, 8
        %v314 = vld [vmem:[%s313] sm:$0xf]
        %v315 = vld [vmem:[%s313 + $0x4] sm:$0xf]
        %v316 = vunpack.c.l.bf16 %v314
        %v317 = vunpack.c.l.bf16 %v315
        %v318 = vpack.c.bf16 %v312, %v311
        %319 = vmatpush.bf16.msra.mxu0 %v286
        %320 = vmatpush.bf16.msra.mxu0 %v285
        %321 = vmatpush.bf16.msra.mxu0 %v284
        %322 = vmatpush.bf16.msra.mxu0 %v283
        %323 = vmatpush.bf16.msra.mxu0 %v282
        %324 = vmatpush.bf16.msra.mxu0 %v281
        %325 = vmatpush.bf16.msra.mxu0 %v280
        %326 = vmatpush.bf16.msra.mxu0 %v279
        %327 = vmatmul.bf16.gmra.mxu0 %v318
        %v328 = vpop.f32.mrf.mxu0
        %v329 = vadd.f32 0.0, %v328
        %v330 = vpop.f32.mrf.mxu0
        %v331 = vadd.f32 0.0, %v330
        %332 = vdwg.mxu0
        %v333 = vadd.f32 %v316, %v329
        %v334 = vadd.f32 %v317, %v331
        %v335 = vtanh.pop %v333
        %v336 = vtanh.pop %v334
        %s337 = scalar_lea.vmem %s210, 16
        %v338 = vld [vmem:[%s337] sm:$0xf]
        %v339 = vld [vmem:[%s337 + $0x4] sm:$0xf]
        %v340 = vunpack.c.l.bf16 %v338
        %v341 = vunpack.c.l.bf16 %v339
        %v342 = vpack.c.bf16 %v336, %v335
        %343 = vmatpush.bf16.msra.mxu0 %v286
        %344 = vmatpush.bf16.msra.mxu0 %v285
        %345 = vmatpush.bf16.msra.mxu0 %v284
        %346 = vmatpush.bf16.msra.mxu0 %v283
        %347 = vmatpush.bf16.msra.mxu0 %v282
        %348 = vmatpush.bf16.msra.mxu0 %v281
        %349 = vmatpush.bf16.msra.mxu0 %v280
        %350 = vmatpush.bf16.msra.mxu0 %v279
        %351 = vmatmul.bf16.gmra.mxu0 %v342
        %v352 = vpop.f32.mrf.mxu0
        %v353 = vadd.f32 0.0, %v352
        %v354 = vpop.f32.mrf.mxu0
        %v355 = vadd.f32 0.0, %v354
        %356 = vdwg.mxu0
        %v357 = vadd.f32 %v340, %v353
        %v358 = vadd.f32 %v341, %v355
        %v359 = vtanh.pop %v357
        %v360 = vtanh.pop %v358
        %361 = vst [vmem:[#allocation2] sm:$0xff] %v359
        %362 = vst [vmem:[#allocation2 + $0x8] sm:$0xff] %v360
      $region48: #{rnn_model_forward.1} parent=39 // pred_fallthru
        _
      %p363 = scmp.eq.s32.totalorder %s16, 2
      // Predicated region
      $region49: #{rnn_model_forward.1} parent=39 // pred_check
        %p364 = pneg %p363
      $region50: #{rnn_model_forward.1} parent=39 // pred_check_branch
        %366 = sbr.rel (%p364) target = $region52
      $region51: #{rnn_model_forward.1} parent=39 // pred_region
        %v367 = vld [vmem:[#allocation2] sm:$0xff]
        %v368 = vld [vmem:[#allocation2 + $0x8] sm:$0xff]
        %v369 = vld [vmem:[%s210] sm:$0xf]
        %v370 = vld [vmem:[%s210 + $0x4] sm:$0xf]
        %v371 = vunpack.c.l.bf16 %v369
        %v372 = vunpack.c.l.bf16 %v370
        %v373 = vpack.c.bf16 %v368, %v367
        %v390 = vunpack.c.l.b16 %v220
        %v391 = vunpack.c.l.b16 %v221
        %v392 = vunpack.c.l.b16 %v222
        %v393 = vunpack.c.l.b16 %v223
        %v394 = vunpack.c.l.b16 %v224
        %v395 = vunpack.c.l.b16 %v225
        %v396 = vunpack.c.l.b16 %v226
        %v397 = vunpack.c.l.b16 %v227
        %v398 = vunpack.c.l.b16 %v228
        %v399 = vunpack.c.l.b16 %v229
        %v400 = vunpack.c.l.b16 %v230
        %v401 = vunpack.c.l.b16 %v231
        %v402 = vunpack.c.l.b16 %v232
        %v403 = vunpack.c.l.b16 %v233
        %v404 = vunpack.c.l.b16 %v234
        %v405 = vunpack.c.l.b16 %v235
        %v406 = vpack.c.b16 %v391, %v390
        %v407 = vpack.c.b16 %v393, %v392
        %v408 = vpack.c.b16 %v395, %v394
        %v409 = vpack.c.b16 %v397, %v396
        %v410 = vpack.c.b16 %v399, %v398
        %v411 = vpack.c.b16 %v401, %v400
        %v412 = vpack.c.b16 %v403, %v402
        %v413 = vpack.c.b16 %v405, %v404
        %422 = vmatpush.bf16.msra.mxu0 %v413
        %423 = vmatpush.bf16.msra.mxu0 %v412
        %424 = vmatpush.bf16.msra.mxu0 %v411
        %425 = vmatpush.bf16.msra.mxu0 %v410
        %426 = vmatpush.bf16.msra.mxu0 %v409
        %427 = vmatpush.bf16.msra.mxu0 %v408
        %428 = vmatpush.bf16.msra.mxu0 %v407
        %429 = vmatpush.bf16.msra.mxu0 %v406
        %430 = vmatmul.bf16.gmra.mxu0 %v373
        %v431 = vpop.f32.mrf.mxu0
        %v432 = vadd.f32 0.0, %v431
        %v433 = vpop.f32.mrf.mxu0
        %v434 = vadd.f32 0.0, %v433
        %435 = vdwg.mxu0
        %v436 = vadd.f32 %v371, %v432
        %v437 = vadd.f32 %v372, %v434
        %v438 = vtanh.pop %v436
        %v439 = vtanh.pop %v437
        %s440 = scalar_lea.vmem %s210, 8
        %v441 = vld [vmem:[%s440] sm:$0xf]
        %v442 = vld [vmem:[%s440 + $0x4] sm:$0xf]
        %v443 = vunpack.c.l.bf16 %v441
        %v444 = vunpack.c.l.bf16 %v442
        %v445 = vpack.c.bf16 %v439, %v438
        %446 = vmatpush.bf16.msra.mxu0 %v413
        %447 = vmatpush.bf16.msra.mxu0 %v412
        %448 = vmatpush.bf16.msra.mxu0 %v411
        %449 = vmatpush.bf16.msra.mxu0 %v410
        %450 = vmatpush.bf16.msra.mxu0 %v409
        %451 = vmatpush.bf16.msra.mxu0 %v408
        %452 = vmatpush.bf16.msra.mxu0 %v407
        %453 = vmatpush.bf16.msra.mxu0 %v406
        %454 = vmatmul.bf16.gmra.mxu0 %v445
        %v455 = vpop.f32.mrf.mxu0
        %v456 = vadd.f32 0.0, %v455
        %v457 = vpop.f32.mrf.mxu0
        %v458 = vadd.f32 0.0, %v457
        %459 = vdwg.mxu0
        %v460 = vadd.f32 %v443, %v456
        %v461 = vadd.f32 %v444, %v458
        %v462 = vtanh.pop %v460
        %v463 = vtanh.pop %v461
        %464 = vst [vmem:[#allocation2] sm:$0xff] %v462
        %465 = vst [vmem:[#allocation2 + $0x8] sm:$0xff] %v463
        %v466 = vld [vmem:[#allocation2] sm:$0xff]
        %v467 = vld [vmem:[#allocation2 + $0x8] sm:$0xff]
        %v468 = vld [vmem:[%s3] sm:$0xff]
        %v469 = vld [vmem:[%s3 + $0x8] sm:$0xff]
        %v470 = vld [vmem:[%s3 + $0x10] sm:$0xff]
        %v471 = vld [vmem:[%s3 + $0x18] sm:$0xff]
        %v472 = vld [vmem:[%s3 + $0x20] sm:$0xff]
        %v473 = vld [vmem:[%s3 + $0x28] sm:$0xff]
        %v474 = vld [vmem:[%s3 + $0x30] sm:$0xff]
        %v475 = vld [vmem:[%s3 + $0x38] sm:$0xff]
        %v476 = vld [vmem:[%s3 + $0x40] sm:$0xff]
        %v477 = vld [vmem:[%s3 + $0x48] sm:$0xff]
        %v478 = vld [vmem:[%s3 + $0x50] sm:$0xff]
        %v479 = vld [vmem:[%s3 + $0x58] sm:$0xff]
        %v480 = vld [vmem:[%s3 + $0x60] sm:$0xff]
        %v481 = vld [vmem:[%s3 + $0x68] sm:$0xff]
        %v482 = vld [vmem:[%s3 + $0x70] sm:$0xff]
        %v483 = vld [vmem:[%s3 + $0x78] sm:$0xff]
        %v484 = vld [vmem:[%s4] sm:$0x1]
        %v486 = vperm.slane %v484, 0
        %488 = vmatpush.msra.mxu0 %v483
        %489 = vmatpush.msra.mxu0 %v482
        %490 = vmatpush.msra.mxu0 %v481
        %491 = vmatpush.msra.mxu0 %v480
        %492 = vmatpush.msra.mxu0 %v479
        %493 = vmatpush.msra.mxu0 %v478
        %494 = vmatpush.msra.mxu0 %v477
        %495 = vmatpush.msra.mxu0 %v476
        %496 = vmatpush.msra.mxu0 %v475
        %497 = vmatpush.msra.mxu0 %v474
        %498 = vmatpush.msra.mxu0 %v473
        %499 = vmatpush.msra.mxu0 %v472
        %500 = vmatpush.msra.mxu0 %v471
        %501 = vmatpush.msra.mxu0 %v470
        %502 = vmatpush.msra.mxu0 %v469
        %503 = vmatpush.msra.mxu0 %v468
        %504 = vmatmul.f32.gmra.mxu0 %v466
        %v505 = vpop.f32.mrf.mxu0
        %v506 = vadd.f32 %v486, %v505
        %507 = vmatmul.f32.gmra.mxu0 %v467
        %v508 = vpop.f32.mrf.mxu0
        %v509 = vadd.f32 %v486, %v508
        %510 = vdwg.mxu0
        %511 = vst [vmem:[%s5] sm:$0xff] %v506
        %512 = vst [vmem:[%s5 + $0x8] sm:$0xff] %v509
      $region52: #{rnn_model_forward.1} parent=39 // pred_fallthru
        _
      // Predicated region
      $region53: #{rnn_model_forward.1} parent=39 // pred_check
        %p513 = pneg %p139
      $region54: #{rnn_model_forward.1} parent=39 // pred_check_branch
        %515 = sbr.rel (%p513) target = $region56
      $region55: #{rnn_model_forward.1} parent=39 // pred_region
        _
      $region56: #{rnn_model_forward.1} parent=39 // pred_fallthru
        _
      // Predicated region
      $region57: #{rnn_model_forward.1} parent=39 // pred_check
        %p516 = pneg %p139
      $region58: #{rnn_model_forward.1} parent=39 // pred_check_branch
        %518 = sbr.rel (%p516) target = $region60
      $region59: #{rnn_model_forward.1} parent=39 // pred_region
        _
      $region60: #{rnn_model_forward.1} parent=39 // pred_fallthru
        _
    $region40: #{rnn_model_forward.1} parent=5 // pred_fallthru
      _
    %p519 = scmp.le.s32.totalorder 2, %s11
    // Predicated region
    $region61: #{rnn_model_forward.1} parent=5 // pred_check
      %p520 = pneg %p519
    $region62: #{rnn_model_forward.1} parent=5 // pred_check_branch
      %522 = sbr.rel (%p520) target = $region64
    $region63: #{rnn_model_forward.1} parent=5 // pred_region
      %s523 = ssub.s32 %s11, 2
    $region64: #{rnn_model_forward.1} parent=5 // pred_fallthru
      _
  $region6: #{rnn_model_forward.1} parent=0 // loop_footer
    %s15 = sadd.s32 1, %s11
  $region7: #{rnn_model_forward.1} parent=0 // loop_footer_branch
    %10 = sbr.rel target = $region3
  $region8: #{rnn_model_forward.1} parent=0 // loop_exit
    _

</llo_original>
